<compile_context>
chip_gen: v7x
topology: tpu7x:2x2x1
jax: 0.10.0
libtpu: 0.0.40
codegen_flags: <defaults>
</compile_context>

<pallas_src>
import math

import jax
import jax.numpy as jnp
from jax.experimental import pallas as pl
from jax.experimental.pallas import tpu as pltpu


K_CHUNK = 256  # layer-1 reduction-chunk size (input_size=1024 -> 4 grid steps)
H1, H2, H3, OUT = 256, 128, 64, 10


def _mlp_kernel(x_ref,
                w1_ref, b1_ref,
                w2_ref, b2_ref,
                w3_ref, b3_ref,
                w4_ref, b4_ref,
                o_ref,
                h1_acc):
    k = pl.program_id(0)

    @pl.when(k == 0)
    def _():
        h1_acc[...] = jnp.zeros_like(h1_acc)

    # Layer-1 partial matmul over this K chunk: bf16 operands on the MXU,
    # f32 accumulation in VMEM scratch. This is the only per-iteration work,
    # so the w1/x chunk DMAs are double-buffered against it.
    h1_acc[...] += jnp.dot(x_ref[...].astype(jnp.bfloat16), w1_ref[...],
                           preferred_element_type=jnp.float32)

    @pl.when(k == pl.num_programs(0) - 1)
    def _():
        # Finish layer 1, then run layers 2-4 + softmax once.
        h1 = jnp.maximum(h1_acc[...] + b1_ref[...], 0.0)

        h2 = jnp.dot(h1.astype(jnp.bfloat16), w2_ref[...],
                     preferred_element_type=jnp.float32) + b2_ref[...]
        h2 = jnp.maximum(h2, 0.0)

        h3 = jnp.dot(h2.astype(jnp.bfloat16), w3_ref[...],
                     preferred_element_type=jnp.float32) + b3_ref[...]
        h3 = jnp.maximum(h3, 0.0)

        logits = jnp.dot(h3.astype(jnp.bfloat16), w4_ref[...],
                         preferred_element_type=jnp.float32) + b4_ref[...]

        # Numerically stable softmax over dim=1 (f32). Divide -> EUP reciprocal.
        m = jnp.max(logits, axis=-1, keepdims=True)
        e = jnp.exp(logits - m)
        inv = pl.reciprocal(jnp.sum(e, axis=-1, keepdims=True), approx=True)
        o_ref[...] = e * inv


def neural_net_forward(x_nchw, params):
    """x_nchw: (B, C, H, W) float32. Returns (B, 10) softmax probabilities."""
    b = x_nchw.shape[0]
    x2d = x_nchw.reshape(b, -1)  # same as torch x.view(B, -1)
    in_size = x2d.shape[1]
    assert in_size % K_CHUNK == 0
    n_k = in_size // K_CHUNK

    (w1, b1), (w2, b2), (w3, b3), (w4, b4) = params

    def resident(shape):
        # Grid-invariant block: same tile every iteration -> stays VMEM resident.
        return pl.BlockSpec(shape, lambda k, _s=shape: tuple(0 for _ in _s))

    grid_spec = pltpu.PrefetchScalarGridSpec(
        num_scalar_prefetch=0,
        grid=(n_k,),
        in_specs=[
            pl.BlockSpec((b, K_CHUNK), lambda k: (0, k)),       # x: K chunk
            pl.BlockSpec((K_CHUNK, H1), lambda k: (k, 0)),      # w1: K chunk
            resident(b1.shape),
            resident(w2.shape), resident(b2.shape),
            resident(w3.shape), resident(b3.shape),
            resident(w4.shape), resident(b4.shape),
        ],
        out_specs=pl.BlockSpec((b, OUT), lambda k: (0, 0)),
        scratch_shapes=[pltpu.VMEM((b, H1), jnp.float32)],      # layer-1 accumulator
    )

    return pl.pallas_call(
        _mlp_kernel,
        out_shape=jax.ShapeDtypeStruct((b, OUT), jnp.float32),
        grid_spec=grid_spec,
        compiler_params=pltpu.CompilerParams(
            dimension_semantics=("arbitrary",)),
    )(x2d, w1, b1, w2, b2, w3, b3, w4, b4)


def init_params(key, input_size):
    """Deterministic init matching torch.nn.Linear's default:
    U(-1/sqrt(fan_in), 1/sqrt(fan_in)) for both weight and bias.
    Weights are stored bf16 (DMA-bound kernel); biases stay f32."""
    dims = [input_size, H1, H2, H3, OUT]
    params = []
    for i in range(4):
        fan_in, fan_out = dims[i], dims[i + 1]
        key, kw, kb = jax.random.split(key, 3)
        bound = 1.0 / math.sqrt(fan_in)
        w = jax.random.uniform(kw, (fan_in, fan_out), jnp.float32, -bound, bound)
        w = w.astype(jnp.bfloat16)
        # Bias kept 2D (1, fan_out) f32 for TPU-friendly layout; broadcasts in-kernel.
        bvec = jax.random.uniform(kb, (1, fan_out), jnp.float32, -bound, bound)
        params.append((w, bvec))
    return params


def reference_forward(x_nchw, params):
    """Pure-JAX reference mirroring the kernel's precision path (bf16 matmul
    operands, f32 accumulation / softmax)."""
    b = x_nchw.shape[0]
    h = x_nchw.reshape(b, -1)

    def lin(a, w, bias):
        return jnp.dot(a.astype(jnp.bfloat16), w,
                       preferred_element_type=jnp.float32) + bias

    (w1, b1), (w2, b2), (w3, b3), (w4, b4) = params
    h = jnp.maximum(lin(h, w1, b1), 0.0)
    h = jnp.maximum(lin(h, w2, b2), 0.0)
    h = jnp.maximum(lin(h, w3, b3), 0.0)
    logits = lin(h, w4, b4)
    return jax.nn.softmax(logits, axis=-1)


if __name__ == "__main__":
    key = jax.random.PRNGKey(0)
    k_x, k_p = jax.random.split(key)

    B, C, H, W = 2, 4, 16, 16            # input_size = C*H*W = 1024
    x = jax.random.normal(k_x, (B, C, H, W), dtype=jnp.float32)
    params = init_params(k_p, C * H * W)

    out = neural_net_forward(x, params)
    out = jax.block_until_ready(out)

    assert out.shape == (B, OUT)
    # Softmax rows must sum to ~1 (approx reciprocal -> slightly looser tol).
    assert bool(jnp.allclose(jnp.sum(out, axis=1), 1.0, atol=5e-3))
    # Match the pure-JAX reference (same bf16 weight precision path).
    ref = reference_forward(x, params)
    assert bool(jnp.allclose(out, ref, atol=2e-2)), "kernel/reference mismatch"
    print("KERNEL_OK")
</pallas_src>

<mosaic_0001>
module attributes {stable_mosaic.version = 11 : i64} {
  func.func @_mlp_kernel(%arg0: i32, %arg1: memref<2x256xf32, #tpu.memory_space<vmem>>, %arg2: memref<256x256xbf16, #tpu.memory_space<vmem>>, %arg3: memref<1x256xf32, #tpu.memory_space<vmem>>, %arg4: memref<256x128xbf16, #tpu.memory_space<vmem>>, %arg5: memref<1x128xf32, #tpu.memory_space<vmem>>, %arg6: memref<128x64xbf16, #tpu.memory_space<vmem>>, %arg7: memref<1x64xf32, #tpu.memory_space<vmem>>, %arg8: memref<64x10xbf16, #tpu.memory_space<vmem>>, %arg9: memref<1x10xf32, #tpu.memory_space<vmem>>, %arg10: memref<2x10xf32, #tpu.memory_space<vmem>>, %arg11: memref<2x256xf32, #tpu.memory_space<vmem>>) attributes {dimension_semantics = [#tpu.dimension_semantics<arbitrary>], iteration_bounds = array<i64: 4>, scalar_prefetch = 0 : i64, scratch_operands = 1 : i64, tpu.core_type = #tpu.core_type<tc>, window_params = [{transform_indices = @transform_0, window_bounds = array<i64: 2, 256>}, {transform_indices = @transform_1, window_bounds = array<i64: 256, 256>}, {pipeline_mode = #tpu.pipeline_mode<synchronous>, transform_indices = @transform_2, window_bounds = array<i64: 1, 256>}, {pipeline_mode = #tpu.pipeline_mode<synchronous>, transform_indices = @transform_3, window_bounds = array<i64: 256, 128>}, {pipeline_mode = #tpu.pipeline_mode<synchronous>, transform_indices = @transform_4, window_bounds = array<i64: 1, 128>}, {pipeline_mode = #tpu.pipeline_mode<synchronous>, transform_indices = @transform_5, window_bounds = array<i64: 128, 64>}, {pipeline_mode = #tpu.pipeline_mode<synchronous>, transform_indices = @transform_6, window_bounds = array<i64: 1, 64>}, {pipeline_mode = #tpu.pipeline_mode<synchronous>, transform_indices = @transform_7, window_bounds = array<i64: 64, 10>}, {pipeline_mode = #tpu.pipeline_mode<synchronous>, transform_indices = @transform_8, window_bounds = array<i64: 1, 10>}, {pipeline_mode = #tpu.pipeline_mode<synchronous>, transform_indices = @transform_9, window_bounds = array<i64: 2, 10>}]} {
    %c0_i32 = arith.constant 0 : i32
    %0 = arith.cmpi eq, %arg0, %c0_i32 : i32
    %1 = arith.extui %0 : i1 to i32
    %c0_i32_0 = arith.constant 0 : i32
    %2 = arith.cmpi ne, %1, %c0_i32_0 : i32
    scf.if %2 {
      %cst_9 = arith.constant 0.000000e+00 : f32
      %13 = vector.broadcast %cst_9 : f32 to vector<2x256xf32>
      %c0_10 = arith.constant 0 : index
      %c0_11 = arith.constant 0 : index
      %14 = vector.load %arg11[%c0_10, %c0_11] : memref<2x256xf32, #tpu.memory_space<vmem>>, vector<2x256xf32>
      tpu.vector_store %arg11[%c0_10, %c0_11], %13 {strides = array<i32>} : memref<2x256xf32, #tpu.memory_space<vmem>>, vector<2x256xf32>,
    } else {
    }
    %c0 = arith.constant 0 : index
    %c0_1 = arith.constant 0 : index
    %3 = vector.load %arg11[%c0, %c0_1] : memref<2x256xf32, #tpu.memory_space<vmem>>, vector<2x256xf32>
    %c0_2 = arith.constant 0 : index
    %c0_3 = arith.constant 0 : index
    %4 = vector.load %arg1[%c0_2, %c0_3] : memref<2x256xf32, #tpu.memory_space<vmem>>, vector<2x256xf32>
    %5 = arith.truncf %4 : vector<2x256xf32> to vector<2x256xbf16>
    %c0_4 = arith.constant 0 : index
    %c0_5 = arith.constant 0 : index
    %6 = vector.load %arg2[%c0_4, %c0_5] : memref<256x256xbf16, #tpu.memory_space<vmem>>, vector<256x256xbf16>
    %cst = arith.constant dense<0.000000e+00> : vector<2x256xf32>
    %7 = tpu.matmul %5, %6, %cst {dimension_numbers = #tpu.dot_dimension_numbers<[1], [0], [0], [1], [0, 0, 1, 1], [], []>} : vector<2x256xbf16>, vector<256x256xbf16>, vector<2x256xf32> -> vector<2x256xf32>
    %8 = arith.addf %3, %7 : vector<2x256xf32>
    %c0_6 = arith.constant 0 : index
    %c0_7 = arith.constant 0 : index
    %9 = vector.load %arg11[%c0_6, %c0_7] : memref<2x256xf32, #tpu.memory_space<vmem>>, vector<2x256xf32>
    tpu.vector_store %arg11[%c0_6, %c0_7], %8 {strides = array<i32>} : memref<2x256xf32, #tpu.memory_space<vmem>>, vector<2x256xf32>,
    %c3_i32 = arith.constant 3 : i32
    %10 = arith.cmpi eq, %arg0, %c3_i32 : i32
    %11 = arith.extui %10 : i1 to i32
    %c0_i32_8 = arith.constant 0 : i32
    %12 = arith.cmpi ne, %11, %c0_i32_8 : i32
    scf.if %12 {
      %c0_9 = arith.constant 0 : index
      %c0_10 = arith.constant 0 : index
      %13 = vector.load %arg11[%c0_9, %c0_10] : memref<2x256xf32, #tpu.memory_space<vmem>>, vector<2x256xf32>
      %c0_11 = arith.constant 0 : index
      %c0_12 = arith.constant 0 : index
      %14 = vector.load %arg3[%c0_11, %c0_12] : memref<1x256xf32, #tpu.memory_space<vmem>>, vector<1x256xf32>
      %15 = vector.broadcast %14 : vector<1x256xf32> to vector<2x256xf32>
      %16 = arith.addf %13, %15 : vector<2x256xf32>
      %cst_13 = arith.constant 0.000000e+00 : f32
      %17 = vector.broadcast %cst_13 : f32 to vector<2x256xf32>
      %18 = arith.maximumf %16, %17 : vector<2x256xf32>
      %19 = arith.truncf %18 : vector<2x256xf32> to vector<2x256xbf16>
      %c0_14 = arith.constant 0 : index
      %c0_15 = arith.constant 0 : index
      %20 = vector.load %arg4[%c0_14, %c0_15] : memref<256x128xbf16, #tpu.memory_space<vmem>>, vector<256x128xbf16>
      %cst_16 = arith.constant dense<0.000000e+00> : vector<2x128xf32>
      %21 = tpu.matmul %19, %20, %cst_16 {dimension_numbers = #tpu.dot_dimension_numbers<[1], [0], [0], [1], [0, 0, 1, 1], [], []>} : vector<2x256xbf16>, vector<256x128xbf16>, vector<2x128xf32> -> vector<2x128xf32>
      %c0_17 = arith.constant 0 : index
      %c0_18 = arith.constant 0 : index
      %22 = vector.load %arg5[%c0_17, %c0_18] : memref<1x128xf32, #tpu.memory_space<vmem>>, vector<1x128xf32>
      %23 = vector.broadcast %22 : vector<1x128xf32> to vector<2x128xf32>
      %24 = arith.addf %21, %23 : vector<2x128xf32>
      %cst_19 = arith.constant 0.000000e+00 : f32
      %25 = vector.broadcast %cst_19 : f32 to vector<2x128xf32>
      %26 = arith.maximumf %24, %25 : vector<2x128xf32>
      %27 = arith.truncf %26 : vector<2x128xf32> to vector<2x128xbf16>
      %c0_20 = arith.constant 0 : index
      %c0_21 = arith.constant 0 : index
      %28 = vector.load %arg6[%c0_20, %c0_21] : memref<128x64xbf16, #tpu.memory_space<vmem>>, vector<128x64xbf16>
      %cst_22 = arith.constant dense<0.000000e+00> : vector<2x64xf32>
      %29 = tpu.matmul %27, %28, %cst_22 {dimension_numbers = #tpu.dot_dimension_numbers<[1], [0], [0], [1], [0, 0, 1, 1], [], []>} : vector<2x128xbf16>, vector<128x64xbf16>, vector<2x64xf32> -> vector<2x64xf32>
      %c0_23 = arith.constant 0 : index
      %c0_24 = arith.constant 0 : index
      %30 = vector.load %arg7[%c0_23, %c0_24] : memref<1x64xf32, #tpu.memory_space<vmem>>, vector<1x64xf32>
      %31 = vector.broadcast %30 : vector<1x64xf32> to vector<2x64xf32>
      %32 = arith.addf %29, %31 : vector<2x64xf32>
      %cst_25 = arith.constant 0.000000e+00 : f32
      %33 = vector.broadcast %cst_25 : f32 to vector<2x64xf32>
      %34 = arith.maximumf %32, %33 : vector<2x64xf32>
      %35 = arith.truncf %34 : vector<2x64xf32> to vector<2x64xbf16>
      %c0_26 = arith.constant 0 : index
      %c0_27 = arith.constant 0 : index
      %36 = vector.load %arg8[%c0_26, %c0_27] : memref<64x10xbf16, #tpu.memory_space<vmem>>, vector<64x10xbf16>
      %cst_28 = arith.constant dense<0.000000e+00> : vector<2x10xf32>
      %37 = tpu.matmul %35, %36, %cst_28 {dimension_numbers = #tpu.dot_dimension_numbers<[1], [0], [0], [1], [0, 0, 1, 1], [], []>} : vector<2x64xbf16>, vector<64x10xbf16>, vector<2x10xf32> -> vector<2x10xf32>
      %c0_29 = arith.constant 0 : index
      %c0_30 = arith.constant 0 : index
      %38 = vector.load %arg9[%c0_29, %c0_30] : memref<1x10xf32, #tpu.memory_space<vmem>>, vector<1x10xf32>
      %39 = vector.broadcast %38 : vector<1x10xf32> to vector<2x10xf32>
      %40 = arith.addf %37, %39 : vector<2x10xf32>
      %cst_31 = arith.constant dense<0xFF800000> : vector<2xf32>
      %41 = vector.multi_reduction <maximumf>, %40, %cst_31 [1] : vector<2x10xf32> to vector<2xf32>
      %42 = vector.shape_cast %41 : vector<2xf32> to vector<2x1xf32>
      %43 = vector.broadcast %42 : vector<2x1xf32> to vector<2x10xf32>
      %44 = arith.subf %40, %43 : vector<2x10xf32>
      %45 = math.exp %44 : vector<2x10xf32>
      %cst_32 = arith.constant dense<0.000000e+00> : vector<2xf32>
      %46 = vector.multi_reduction <add>, %45, %cst_32 [1] : vector<2x10xf32> to vector<2xf32>
      %47 = vector.shape_cast %46 : vector<2xf32> to vector<2x1xf32>
      %48 = tpu.reciprocal %47 {approx = true} : vector<2x1xf32> -> vector<2x1xf32>
      %49 = vector.broadcast %48 : vector<2x1xf32> to vector<2x10xf32>
      %50 = arith.mulf %45, %49 : vector<2x10xf32>
      %c0_33 = arith.constant 0 : index
      %c0_34 = arith.constant 0 : index
      %51 = vector.load %arg10[%c0_33, %c0_34] : memref<2x10xf32, #tpu.memory_space<vmem>>, vector<2x10xf32>
      tpu.vector_store %arg10[%c0_33, %c0_34], %50 {strides = array<i32>} : memref<2x10xf32, #tpu.memory_space<vmem>>, vector<2x10xf32>,
    } else {
    }
    return
  }
  func.func @transform_0(%arg0: i32) -> (i32, i32) {
    %c0_i32 = arith.constant 0 : i32
    %c0_i32_0 = arith.constant 0 : i32
    return %c0_i32, %arg0 : i32, i32
  }
  func.func @transform_1(%arg0: i32) -> (i32, i32) {
    %c0_i32 = arith.constant 0 : i32
    %c0_i32_0 = arith.constant 0 : i32
    return %arg0, %c0_i32 : i32, i32
  }
  func.func @transform_2(%arg0: i32) -> (i32, i32) {
    %c0_i32 = arith.constant 0 : i32
    %c0_i32_0 = arith.constant 0 : i32
    %c0_i32_1 = arith.constant 0 : i32
    return %c0_i32, %c0_i32_0 : i32, i32
  }
  func.func @transform_3(%arg0: i32) -> (i32, i32) {
    %c0_i32 = arith.constant 0 : i32
    %c0_i32_0 = arith.constant 0 : i32
    %c0_i32_1 = arith.constant 0 : i32
    return %c0_i32, %c0_i32_0 : i32, i32
  }
  func.func @transform_4(%arg0: i32) -> (i32, i32) {
    %c0_i32 = arith.constant 0 : i32
    %c0_i32_0 = arith.constant 0 : i32
    %c0_i32_1 = arith.constant 0 : i32
    return %c0_i32, %c0_i32_0 : i32, i32
  }
  func.func @transform_5(%arg0: i32) -> (i32, i32) {
    %c0_i32 = arith.constant 0 : i32
    %c0_i32_0 = arith.constant 0 : i32
    %c0_i32_1 = arith.constant 0 : i32
    return %c0_i32, %c0_i32_0 : i32, i32
  }
  func.func @transform_6(%arg0: i32) -> (i32, i32) {
    %c0_i32 = arith.constant 0 : i32
    %c0_i32_0 = arith.constant 0 : i32
    %c0_i32_1 = arith.constant 0 : i32
    return %c0_i32, %c0_i32_0 : i32, i32
  }
  func.func @transform_7(%arg0: i32) -> (i32, i32) {
    %c0_i32 = arith.constant 0 : i32
    %c0_i32_0 = arith.constant 0 : i32
    %c0_i32_1 = arith.constant 0 : i32
    return %c0_i32, %c0_i32_0 : i32, i32
  }
  func.func @transform_8(%arg0: i32) -> (i32, i32) {
    %c0_i32 = arith.constant 0 : i32
    %c0_i32_0 = arith.constant 0 : i32
    %c0_i32_1 = arith.constant 0 : i32
    return %c0_i32, %c0_i32_0 : i32, i32
  }
  func.func @transform_9(%arg0: i32) -> (i32, i32) {
    %c0_i32 = arith.constant 0 : i32
    %c0_i32_0 = arith.constant 0 : i32
    %c0_i32_1 = arith.constant 0 : i32
    return %c0_i32, %c0_i32_0 : i32, i32
  }
}

</mosaic_0001>

<llo_original>
// kernel: tpu_custom_call.1
$region0: #{tpu_custom_call.1}
  #allocation0 [shape = 'u32[]', space=smem, size = 0x4, offset = 0x4, fixed_abs, tag = 'smem constant byte address 0x4 - core index']
  #allocation1 [shape = 'u32[144,128]{1,0:T(1,128)}', space=vmem, size = 0x12000, scoped, tag = 'internal scratch']
  #allocation2 [shape = 'f32[2,256]{1,0:T(2,128)}', space=vmem, size = 0x800, scoped, tag = 'scratch operand']
  %s0 = inlined_call_operand.vmem [shape: f32[2,1024], index: 0, kind: input, shape index: {}]
  %s1 = inlined_call_operand.hbm [shape: bf16[1024,256], index: 1, kind: input, shape index: {}]
  %s2 = inlined_call_operand.vmem [shape: f32[1,256], index: 2, kind: input, shape index: {}]
  %s3 = inlined_call_operand.vmem [shape: bf16[256,128], index: 3, kind: input, shape index: {}]
  %s4 = inlined_call_operand.hbm [shape: f32[1,128], index: 4, kind: input, shape index: {}]
  %s5 = inlined_call_operand.vmem [shape: bf16[128,64], index: 5, kind: input, shape index: {}]
  %s6 = inlined_call_operand.vmem [shape: f32[1,64], index: 6, kind: input, shape index: {}]
  %s7 = inlined_call_operand.vmem [shape: bf16[64,10], index: 7, kind: input, shape index: {}]
  %s8 = inlined_call_operand.vmem [shape: f32[1,10], index: 8, kind: input, shape index: {}]
  %s9 = inlined_call_operand.hbm [shape: f32[2,10], index: 9, kind: output, shape index: {}]
  %s10 = sld [smem:[#allocation0]]
  $region85: #{tpu_custom_call.1} parent=0
    _
  %s12 = ssub.s32 1, %s10
  %s13 = scalar_select 0, %s12, %s10
  $region1: #{tpu_custom_call.1} parent=0
    #allocation3 [shape = 'u8[262144]{0}', space=vmem, size = 0x40000, scoped, tag = 'input window, operand 1']
    #allocation4 [shape = 's32[2]{0}', space=sflag, size = 0x8, scoped, tag = 'scoped memory for tpu_custom_call.1']
    #allocation5 [shape = 's32[2]{0}', space=sflag, size = 0x8, scoped, tag = 'scoped memory for tpu_custom_call.1']
    #allocation6 [shape = 'u8[512]{0}', space=vmem, size = 0x400, scoped, tag = 'input window, operand 4, single buffered']
    #allocation7 [shape = 's32[1]{0}', space=sflag, size = 0x4, scoped, tag = 'scoped memory for tpu_custom_call.1']
    #allocation8 [shape = 'u8[1024]{0}', space=vmem, size = 0x400, scoped, tag = 'output window, operand 0, single buffered']
    %14 = vsyncpa [#allocation4], 0
    %s15 = scalar_lea.sflag [#allocation4], 1
    %16 = vsyncpa %s15, 0
    %17 = vsyncpa [#allocation7], 0
    %18 = vsyncpa [#allocation5], 0
    loop: start=0, step=1, limit=6
    $region2: #{tpu_custom_call.1} parent=1 // loop_pre_header
      _
    $region3: #{tpu_custom_call.1} parent=1 // loop_header
      %s20 = sphi 0, %s24
      %p21 = scmp.ge.s32.totalorder %s20, 6
      %s30 = sphi 0, %s32
      %s33 = sphi 0, %s30
      %s34 = sphi 0, %s33
      %s50 = sphi 0, %s34
      %s56 = sphi 0, %s58
      %s59 = sphi 0, %s56
      %s60 = sphi 0, %s59
      %s76 = sphi 0, %s60
      %s80 = sphi 0, %s80
      %s82 = sphi 0, %s80
      %s83 = sphi 0, %s82
      %s97 = sphi 0, %s83
      %s101 = sphi 0, %s101
      %s103 = sphi 0, %s101
      %s104 = sphi 0, %s103
      %s118 = sphi 0, %s104
      %s122 = sphi 0, %s122
      %s124 = sphi 0, %s122
      %s125 = sphi 0, %s124
      %s139 = sphi 0, %s125
      %s143 = sphi 0, %s143
      %s145 = sphi 0, %s143
      %s146 = sphi 0, %s145
      %s160 = sphi 0, %s146
      %s164 = sphi 0, %s164
      %s166 = sphi 0, %s164
      %s167 = sphi 0, %s166
      %s181 = sphi 0, %s167
      %s185 = sphi 0, %s185
      %s187 = sphi 0, %s185
      %s188 = sphi 0, %s187
      %s202 = sphi 0, %s188
      %s206 = sphi 0, %s206
      %s208 = sphi 0, %s206
      %s209 = sphi 0, %s208
      %s223 = sphi 0, %s209
      %s227 = sphi 0, %s227
      %s229 = sphi 0, %s227
      %s230 = sphi 0, %s229
      %s244 = sphi 0, %s230
    $region4: #{tpu_custom_call.1} parent=1 // loop_header_branch
      %23 = sbr.rel (%p21) target = $region8
    $region5: #{tpu_custom_call.1} parent=1 // loop_body
      %s25 = ssub.s32 %s20, 1
      %s26 = ssub.s32 %s20, 2
      %s27 = sadd.s32 %s20, 1
      %s28 = ssub.s32 %s20, %s27
      %p29 = scmp.eq.s32.totalorder %s28, 0
      %s31 = sadd.s32 %s30, 1
      %s32 = scalar_select %p29, %s30, %s31
      %p35 = pneg %p29
      %p36 = scmp.eq.s32.totalorder %s20, 3
      %p37 = por %p35, %p36
      %p38 = scmp.ne.s32.totalorder %s30, %s33
      %p39 = scmp.eq.s32.totalorder %s20, 0
      %p40 = por %p38, %p39
      %p41 = scmp.ne.s32.totalorder %s30, %s33
      %p42 = scmp.eq.s32.totalorder %s25, 3
      %p43 = por %p41, %p42
      %p44 = scmp.ne.s32.totalorder %s33, %s34
      %p45 = scmp.eq.s32.totalorder %s25, 0
      %p46 = por %p44, %p45
      %p47 = scmp.ne.s32.totalorder %s33, %s34
      %p48 = scmp.eq.s32.totalorder %s26, 3
      %p49 = por %p47, %p48
      %p51 = scmp.ne.s32.totalorder %s34, %s50
      %p52 = scmp.eq.s32.totalorder %s26, 0
      %p53 = por %p51, %p52
      %s54 = ssub.s32 %s20, %s27
      %p55 = scmp.eq.s32.totalorder %s54, 0
      %s57 = sadd.s32 %s56, 1
      %s58 = scalar_select %p55, %s56, %s57
      %p61 = pneg %p55
      %p62 = scmp.eq.s32.totalorder %s20, 3
      %p63 = por %p61, %p62
      %p64 = scmp.ne.s32.totalorder %s56, %s59
      %p65 = scmp.eq.s32.totalorder %s20, 0
      %p66 = por %p64, %p65
      %p67 = scmp.ne.s32.totalorder %s56, %s59
      %p68 = scmp.eq.s32.totalorder %s25, 3
      %p69 = por %p67, %p68
      %p70 = scmp.ne.s32.totalorder %s59, %s60
      %p71 = scmp.eq.s32.totalorder %s25, 0
      %p72 = por %p70, %p71
      %p73 = scmp.ne.s32.totalorder %s59, %s60
      %p74 = scmp.eq.s32.totalorder %s26, 3
      %p75 = por %p73, %p74
      %p77 = scmp.ne.s32.totalorder %s60, %s76
      %p78 = scmp.eq.s32.totalorder %s26, 0
      %p79 = por %p77, %p78
      %s81 = sadd.s32 %s80, 1
      %p84 = scmp.eq.s32.totalorder %s20, 3
      %p85 = scmp.ne.s32.totalorder %s80, %s82
      %p86 = scmp.eq.s32.totalorder %s20, 0
      %p87 = por %p85, %p86
      %p88 = scmp.ne.s32.totalorder %s80, %s82
      %p89 = scmp.eq.s32.totalorder %s25, 3
      %p90 = por %p88, %p89
      %p91 = scmp.ne.s32.totalorder %s82, %s83
      %p92 = scmp.eq.s32.totalorder %s25, 0
      %p93 = por %p91, %p92
      %p94 = scmp.ne.s32.totalorder %s82, %s83
      %p95 = scmp.eq.s32.totalorder %s26, 3
      %p96 = por %p94, %p95
      %p98 = scmp.ne.s32.totalorder %s83, %s97
      %p99 = scmp.eq.s32.totalorder %s26, 0
      %p100 = por %p98, %p99
      %s102 = sadd.s32 %s101, 1
      %p105 = scmp.eq.s32.totalorder %s20, 3
      %p106 = scmp.ne.s32.totalorder %s101, %s103
      %p107 = scmp.eq.s32.totalorder %s20, 0
      %p108 = por %p106, %p107
      %p109 = scmp.ne.s32.totalorder %s101, %s103
      %p110 = scmp.eq.s32.totalorder %s25, 3
      %p111 = por %p109, %p110
      %p112 = scmp.ne.s32.totalorder %s103, %s104
      %p113 = scmp.eq.s32.totalorder %s25, 0
      %p114 = por %p112, %p113
      %p115 = scmp.ne.s32.totalorder %s103, %s104
      %p116 = scmp.eq.s32.totalorder %s26, 3
      %p117 = por %p115, %p116
      %p119 = scmp.ne.s32.totalorder %s104, %s118
      %p120 = scmp.eq.s32.totalorder %s26, 0
      %p121 = por %p119, %p120
      %s123 = sadd.s32 %s122, 1
      %p126 = scmp.eq.s32.totalorder %s20, 3
      %p127 = scmp.ne.s32.totalorder %s122, %s124
      %p128 = scmp.eq.s32.totalorder %s20, 0
      %p129 = por %p127, %p128
      %p130 = scmp.ne.s32.totalorder %s122, %s124
      %p131 = scmp.eq.s32.totalorder %s25, 3
      %p132 = por %p130, %p131
      %p133 = scmp.ne.s32.totalorder %s124, %s125
      %p134 = scmp.eq.s32.totalorder %s25, 0
      %p135 = por %p133, %p134
      %p136 = scmp.ne.s32.totalorder %s124, %s125
      %p137 = scmp.eq.s32.totalorder %s26, 3
      %p138 = por %p136, %p137
      %p140 = scmp.ne.s32.totalorder %s125, %s139
      %p141 = scmp.eq.s32.totalorder %s26, 0
      %p142 = por %p140, %p141
      %s144 = sadd.s32 %s143, 1
      %p147 = scmp.eq.s32.totalorder %s20, 3
      %p148 = scmp.ne.s32.totalorder %s143, %s145
      %p149 = scmp.eq.s32.totalorder %s20, 0
      %p150 = por %p148, %p149
      %p151 = scmp.ne.s32.totalorder %s143, %s145
      %p152 = scmp.eq.s32.totalorder %s25, 3
      %p153 = por %p151, %p152
      %p154 = scmp.ne.s32.totalorder %s145, %s146
      %p155 = scmp.eq.s32.totalorder %s25, 0
      %p156 = por %p154, %p155
      %p157 = scmp.ne.s32.totalorder %s145, %s146
      %p158 = scmp.eq.s32.totalorder %s26, 3
      %p159 = por %p157, %p158
      %p161 = scmp.ne.s32.totalorder %s146, %s160
      %p162 = scmp.eq.s32.totalorder %s26, 0
      %p163 = por %p161, %p162
      %s165 = sadd.s32 %s164, 1
      %p168 = scmp.eq.s32.totalorder %s20, 3
      %p169 = scmp.ne.s32.totalorder %s164, %s166
      %p170 = scmp.eq.s32.totalorder %s20, 0
      %p171 = por %p169, %p170
      %p172 = scmp.ne.s32.totalorder %s164, %s166
      %p173 = scmp.eq.s32.totalorder %s25, 3
      %p174 = por %p172, %p173
      %p175 = scmp.ne.s32.totalorder %s166, %s167
      %p176 = scmp.eq.s32.totalorder %s25, 0
      %p177 = por %p175, %p176
      %p178 = scmp.ne.s32.totalorder %s166, %s167
      %p179 = scmp.eq.s32.totalorder %s26, 3
      %p180 = por %p178, %p179
      %p182 = scmp.ne.s32.totalorder %s167, %s181
      %p183 = scmp.eq.s32.totalorder %s26, 0
      %p184 = por %p182, %p183
      %s186 = sadd.s32 %s185, 1
      %p189 = scmp.eq.s32.totalorder %s20, 3
      %p190 = scmp.ne.s32.totalorder %s185, %s187
      %p191 = scmp.eq.s32.totalorder %s20, 0
      %p192 = por %p190, %p191
      %p193 = scmp.ne.s32.totalorder %s185, %s187
      %p194 = scmp.eq.s32.totalorder %s25, 3
      %p195 = por %p193, %p194
      %p196 = scmp.ne.s32.totalorder %s187, %s188
      %p197 = scmp.eq.s32.totalorder %s25, 0
      %p198 = por %p196, %p197
      %p199 = scmp.ne.s32.totalorder %s187, %s188
      %p200 = scmp.eq.s32.totalorder %s26, 3
      %p201 = por %p199, %p200
      %p203 = scmp.ne.s32.totalorder %s188, %s202
      %p204 = scmp.eq.s32.totalorder %s26, 0
      %p205 = por %p203, %p204
      %s207 = sadd.s32 %s206, 1
      %p210 = scmp.eq.s32.totalorder %s20, 3
      %p211 = scmp.ne.s32.totalorder %s206, %s208
      %p212 = scmp.eq.s32.totalorder %s20, 0
      %p213 = por %p211, %p212
      %p214 = scmp.ne.s32.totalorder %s206, %s208
      %p215 = scmp.eq.s32.totalorder %s25, 3
      %p216 = por %p214, %p215
      %p217 = scmp.ne.s32.totalorder %s208, %s209
      %p218 = scmp.eq.s32.totalorder %s25, 0
      %p219 = por %p217, %p218
      %p220 = scmp.ne.s32.totalorder %s208, %s209
      %p221 = scmp.eq.s32.totalorder %s26, 3
      %p222 = por %p220, %p221
      %p224 = scmp.ne.s32.totalorder %s209, %s223
      %p225 = scmp.eq.s32.totalorder %s26, 0
      %p226 = por %p224, %p225
      %s228 = sadd.s32 %s227, 1
      %p231 = scmp.eq.s32.totalorder %s20, 3
      %p232 = scmp.ne.s32.totalorder %s227, %s229
      %p233 = scmp.eq.s32.totalorder %s20, 0
      %p234 = por %p232, %p233
      %p235 = scmp.ne.s32.totalorder %s227, %s229
      %p236 = scmp.eq.s32.totalorder %s25, 3
      %p237 = por %p235, %p236
      %p238 = scmp.ne.s32.totalorder %s229, %s230
      %p239 = scmp.eq.s32.totalorder %s25, 0
      %p240 = por %p238, %p239
      %p241 = scmp.ne.s32.totalorder %s229, %s230
      %p242 = scmp.eq.s32.totalorder %s26, 3
      %p243 = por %p241, %p242
      %p245 = scmp.ne.s32.totalorder %s230, %s244
      %p246 = scmp.eq.s32.totalorder %s26, 0
      %p247 = por %p245, %p246
      %p248 = scmp.le.s32.totalorder 1, %s20
      %p249 = scmp.lt.s32.totalorder %s20, 5
      %p250 = pnand %p248, %p249
      %p251 = pneg %p250
      // Predicated region
      $region9: #{tpu_custom_call.1} parent=5 // pred_check
        _
      $region10: #{tpu_custom_call.1} parent=5 // pred_check_branch
        %253 = sbr.rel (%p250) target = $region12
      $region11: #{tpu_custom_call.1} parent=5 // pred_region
        %s254 = ssub.s32 %s20, 1
        // Predicated region
        $region13: #{tpu_custom_call.1} parent=11 // pred_check
          %p255 = pneg %p93
        $region14: #{tpu_custom_call.1} parent=11 // pred_check_branch
          %257 = sbr.rel (%p255) target = $region16
        $region15: #{tpu_custom_call.1} parent=11 // pred_region
          _
        $region16: #{tpu_custom_call.1} parent=11 // pred_fallthru
          _
        // Predicated region
        $region17: #{tpu_custom_call.1} parent=11 // pred_check
          %p258 = pneg %p114
        $region18: #{tpu_custom_call.1} parent=11 // pred_check_branch
          %260 = sbr.rel (%p258) target = $region20
        $region19: #{tpu_custom_call.1} parent=11 // pred_region
          _
        $region20: #{tpu_custom_call.1} parent=11 // pred_fallthru
          _
        // Predicated region
        $region21: #{tpu_custom_call.1} parent=11 // pred_check
          %p261 = pneg %p135
        $region22: #{tpu_custom_call.1} parent=11 // pred_check_branch
          %263 = sbr.rel (%p261) target = $region24
        $region23: #{tpu_custom_call.1} parent=11 // pred_region
          %s265 = ssub.s32 16, 16
          %266 = vsyncadd [#allocation7], %s265
          %s268 = sshll.u32 [#allocation6], 4
          %s269 = int_to_ptr.vmem [resolvable:$true] %s268
          %271 = dma.hbm_to_vmem [thread:$0]  %s4, 16, %s269, [#allocation7]
        $region24: #{tpu_custom_call.1} parent=11 // pred_fallthru
          _
        // Predicated region
        $region25: #{tpu_custom_call.1} parent=11 // pred_check
          %p272 = pneg %p156
        $region26: #{tpu_custom_call.1} parent=11 // pred_check_branch
          %274 = sbr.rel (%p272) target = $region28
        $region27: #{tpu_custom_call.1} parent=11 // pred_region
          _
        $region28: #{tpu_custom_call.1} parent=11 // pred_fallthru
          _
        // Predicated region
        $region29: #{tpu_custom_call.1} parent=11 // pred_check
          %p275 = pneg %p177
        $region30: #{tpu_custom_call.1} parent=11 // pred_check_branch
          %277 = sbr.rel (%p275) target = $region32
        $region31: #{tpu_custom_call.1} parent=11 // pred_region
          _
        $region32: #{tpu_custom_call.1} parent=11 // pred_fallthru
          _
        // Predicated region
        $region33: #{tpu_custom_call.1} parent=11 // pred_check
          %p278 = pneg %p198
        $region34: #{tpu_custom_call.1} parent=11 // pred_check_branch
          %280 = sbr.rel (%p278) target = $region36
        $region35: #{tpu_custom_call.1} parent=11 // pred_region
          _
        $region36: #{tpu_custom_call.1} parent=11 // pred_fallthru
          _
        // Predicated region
        $region37: #{tpu_custom_call.1} parent=11 // pred_check
          %p281 = pneg %p219
        $region38: #{tpu_custom_call.1} parent=11 // pred_check_branch
          %283 = sbr.rel (%p281) target = $region40
        $region39: #{tpu_custom_call.1} parent=11 // pred_region
          _
        $region40: #{tpu_custom_call.1} parent=11 // pred_fallthru
          _
      $region12: #{tpu_custom_call.1} parent=5 // pred_fallthru
        _
      %p284 = scmp.lt.s32.totalorder %s20, 4
      // Predicated region
      $region41: #{tpu_custom_call.1} parent=5 // pred_check
        %p285 = pneg %p284
      $region42: #{tpu_custom_call.1} parent=5 // pred_check_branch
        %287 = sbr.rel (%p285) target = $region44
      $region43: #{tpu_custom_call.1} parent=5 // pred_region
        // Predicated region
        $region45: #{tpu_custom_call.1} parent=43 // pred_check
          %p288 = pneg %p40
        $region46: #{tpu_custom_call.1} parent=43 // pred_check_branch
          %290 = sbr.rel (%p288) target = $region48
        $region47: #{tpu_custom_call.1} parent=43 // pred_region
          %s291 = smul.u32 2, %s20
          %p292 = scmp.lt.s32.totalorder %s291, 7
          %s293 = scalar_select %p292, %s291, 7
          %s294 = smul.addr %s293, 2
          %s295 = scalar_lea.vmem %s0, %s294
          %s296 = smul.u32 2, %s20
        $region48: #{tpu_custom_call.1} parent=43 // pred_fallthru
          _
        // Predicated region
        $region49: #{tpu_custom_call.1} parent=43 // pred_check
          %p297 = pneg %p66
        $region50: #{tpu_custom_call.1} parent=43 // pred_check_branch
          %299 = sbr.rel (%p297) target = $region52
        $region51: #{tpu_custom_call.1} parent=43 // pred_region
          %s300 = sand.u32 %s56, 1
          %s301 = scalar_lea.sflag [#allocation4], %s300
          %s302 = sand.u32 %s56, 1
          %s303 = smul.addr %s302, 256
          %s304 = scalar_lea.vmem [#allocation3], %s303
          %s305 = smul.u32 32, %s20
          %s307 = ssub.s32 4096, 4096
          %308 = vsyncadd %s301, %s307
          %s309 = smul.addr %s305, 2
          %s310 = smul.addr %s309, 64
          %s311 = scalar_lea.hbm %s1, %s310
          %s312 = sshll.u32 %s304, 4
          %s313 = int_to_ptr.vmem [resolvable:$true] %s312
          %318 = dma.hbm_to_vmem [thread:$0]  %s311, 4096, %s313, %s301, 128, 128, 8
        $region52: #{tpu_custom_call.1} parent=43 // pred_fallthru
          _
      $region44: #{tpu_custom_call.1} parent=5 // pred_fallthru
        _
      %p319 = scmp.le.s32.totalorder 1, %s20
      %p320 = scmp.lt.s32.totalorder %s20, 5
      %p321 = pnand %p319, %p320
      %p322 = pneg %p321
      // Predicated region
      $region53: #{tpu_custom_call.1} parent=5 // pred_check
        _
      $region54: #{tpu_custom_call.1} parent=5 // pred_check_branch
        %324 = sbr.rel (%p321) target = $region56
      $region55: #{tpu_custom_call.1} parent=5 // pred_region
        %s325 = ssub.s32 %s20, 1
        %s326 = sand.u32 %s59, 1
        %s327 = scalar_lea.sflag [#allocation4], %s326
        %s328 = sand.u32 %s59, 1
        %s329 = smul.addr %s328, 256
        %s330 = scalar_lea.vmem [#allocation3], %s329
        // Predicated region
        $region57: #{tpu_custom_call.1} parent=55 // pred_check
          %p331 = pneg %p72
        $region58: #{tpu_custom_call.1} parent=55 // pred_check_branch
          %333 = sbr.rel (%p331) target = $region60
        $region59: #{tpu_custom_call.1} parent=55 // pred_region
          %334 = dma.done %s327, 4096
        $region60: #{tpu_custom_call.1} parent=55 // pred_fallthru
          _
        // Predicated region
        $region61: #{tpu_custom_call.1} parent=55 // pred_check
          %p335 = pneg %p135
        $region62: #{tpu_custom_call.1} parent=55 // pred_check_branch
          %337 = sbr.rel (%p335) target = $region64
        $region63: #{tpu_custom_call.1} parent=55 // pred_region
          %338 = dma.done [#allocation7], 16
        $region64: #{tpu_custom_call.1} parent=55 // pred_fallthru
          _
        %s339 = smul.u32 2, %s25
        %p340 = scmp.lt.s32.totalorder %s339, 7
        %s341 = scalar_select %p340, %s339, 7
        %s342 = smul.addr %s341, 2
        %s343 = scalar_lea.vmem %s0, %s342
        %p344 = pneg %p46
        %p345 = pneg %p43
        %s346 = sand.u32 %s59, 1
        %s347 = scalar_lea.sflag [#allocation4], %s346
        %s348 = sand.u32 %s59, 1
        %s349 = smul.addr %s348, 256
        %s350 = scalar_lea.vmem [#allocation3], %s349
        %p351 = pneg %p72
        %p352 = pneg %p69
        %p353 = pneg %p93
        %p354 = pneg %p90
        %p355 = pneg %p114
        %p356 = pneg %p111
        %p357 = pneg %p135
        %p358 = pneg %p132
        %p359 = pneg %p156
        %p360 = pneg %p153
        %p361 = pneg %p177
        %p362 = pneg %p174
        %p363 = pneg %p198
        %p364 = pneg %p195
        %p365 = pneg %p219
        %p366 = pneg %p216
        %p367 = pneg %p240
        %p368 = pneg %p237
        %s369 = smul.u32 2, %s25
        %p370 = scmp.lt.s32.totalorder %s369, 7
        %s371 = scalar_select %p370, %s369, 7
        %s372 = smul.addr %s371, 2
        %s373 = scalar_lea.vmem %s0, %s372
        %s374 = smul.u32 2, %s25
        %s375 = smul.u32 32, %s25
        %p377 = scmp.eq.s32.totalorder %s25, 0
        // Predicated region
        $region65: #{tpu_custom_call.1} parent=55 // pred_check
          %p378 = pneg %p377
        $region66: #{tpu_custom_call.1} parent=55 // pred_check_branch
          %380 = sbr.rel (%p378) target = $region68
        $region67: #{tpu_custom_call.1} parent=55 // pred_region
          %381 = vst [vmem:[#allocation2] sm:$0xf] 0.0
        $region68: #{tpu_custom_call.1} parent=55 // pred_fallthru
          _
        %v382 = vld [vmem:[#allocation2] sm:$0xf]
        %v383 = vld [vmem:[%s373] sm:$0xf]
        %v386 = vunpack.c.l.s4 1983009808
        %v387 = vunpack.c.0.s8 %v386
        %v388 = vlaneseq
        %v389 = vshrl.u32 %v388, 7
        %v390 = vsub.s32 %v387, %v389
        %v391 = vrot.slane %v383, %v390
        %v392 = vcombine.high %v391, %v391
        %v395 = vpack.c.bf16 %v391, %v391
        %v396 = vpack.c.bf16 %v392, %v392
        %v397 = vld [vmem:[%s330] sm:$0xff]
        %v398 = vld [vmem:[%s330 + $0x8] sm:$0xff]
        %v399 = vld [vmem:[%s330 + $0x10] sm:$0xff]
        %v400 = vld [vmem:[%s330 + $0x18] sm:$0xff]
        %v401 = vld [vmem:[%s330 + $0x20] sm:$0xff]
        %v402 = vld [vmem:[%s330 + $0x28] sm:$0xff]
        %v403 = vld [vmem:[%s330 + $0x30] sm:$0xff]
        %v404 = vld [vmem:[%s330 + $0x38] sm:$0xff]
        %v405 = vld [vmem:[%s330 + $0x40] sm:$0xff]
        %v406 = vld [vmem:[%s330 + $0x48] sm:$0xff]
        %v407 = vld [vmem:[%s330 + $0x50] sm:$0xff]
        %v408 = vld [vmem:[%s330 + $0x58] sm:$0xff]
        %v409 = vld [vmem:[%s330 + $0x60] sm:$0xff]
        %v410 = vld [vmem:[%s330 + $0x68] sm:$0xff]
        %v411 = vld [vmem:[%s330 + $0x70] sm:$0xff]
        %v412 = vld [vmem:[%s330 + $0x78] sm:$0xff]
        %v413 = vld [vmem:[%s330 + $0x80] sm:$0xff]
        %v414 = vld [vmem:[%s330 + $0x88] sm:$0xff]
        %v415 = vld [vmem:[%s330 + $0x90] sm:$0xff]
        %v416 = vld [vmem:[%s330 + $0x98] sm:$0xff]
        %v417 = vld [vmem:[%s330 + $0xa0] sm:$0xff]
        %v418 = vld [vmem:[%s330 + $0xa8] sm:$0xff]
        %v419 = vld [vmem:[%s330 + $0xb0] sm:$0xff]
        %v420 = vld [vmem:[%s330 + $0xb8] sm:$0xff]
        %v421 = vld [vmem:[%s330 + $0xc0] sm:$0xff]
        %v422 = vld [vmem:[%s330 + $0xc8] sm:$0xff]
        %v423 = vld [vmem:[%s330 + $0xd0] sm:$0xff]
        %v424 = vld [vmem:[%s330 + $0xd8] sm:$0xff]
        %v425 = vld [vmem:[%s330 + $0xe0] sm:$0xff]
        %v426 = vld [vmem:[%s330 + $0xe8] sm:$0xff]
        %v427 = vld [vmem:[%s330 + $0xf0] sm:$0xff]
        %v428 = vld [vmem:[%s330 + $0xf8] sm:$0xff]
        %v461 = vunpack.c.l.b16 %v397
        %v462 = vunpack.c.h.b16 %v397
        %v463 = vunpack.c.l.b16 %v398
        %v464 = vunpack.c.h.b16 %v398
        %v465 = vunpack.c.l.b16 %v399
        %v466 = vunpack.c.h.b16 %v399
        %v467 = vunpack.c.l.b16 %v400
        %v468 = vunpack.c.h.b16 %v400
        %v469 = vunpack.c.l.b16 %v401
        %v470 = vunpack.c.h.b16 %v401
        %v471 = vunpack.c.l.b16 %v402
        %v472 = vunpack.c.h.b16 %v402
        %v473 = vunpack.c.l.b16 %v403
        %v474 = vunpack.c.h.b16 %v403
        %v475 = vunpack.c.l.b16 %v404
        %v476 = vunpack.c.h.b16 %v404
        %v477 = vunpack.c.l.b16 %v405
        %v478 = vunpack.c.h.b16 %v405
        %v479 = vunpack.c.l.b16 %v406
        %v480 = vunpack.c.h.b16 %v406
        %v481 = vunpack.c.l.b16 %v407
        %v482 = vunpack.c.h.b16 %v407
        %v483 = vunpack.c.l.b16 %v408
        %v484 = vunpack.c.h.b16 %v408
        %v485 = vunpack.c.l.b16 %v409
        %v486 = vunpack.c.h.b16 %v409
        %v487 = vunpack.c.l.b16 %v410
        %v488 = vunpack.c.h.b16 %v410
        %v489 = vunpack.c.l.b16 %v411
        %v490 = vunpack.c.h.b16 %v411
        %v491 = vunpack.c.l.b16 %v412
        %v492 = vunpack.c.h.b16 %v412
        %v493 = vunpack.c.l.b16 %v413
        %v494 = vunpack.c.h.b16 %v413
        %v495 = vunpack.c.l.b16 %v414
        %v496 = vunpack.c.h.b16 %v414
        %v497 = vunpack.c.l.b16 %v415
        %v498 = vunpack.c.h.b16 %v415
        %v499 = vunpack.c.l.b16 %v416
        %v500 = vunpack.c.h.b16 %v416
        %v501 = vunpack.c.l.b16 %v417
        %v502 = vunpack.c.h.b16 %v417
        %v503 = vunpack.c.l.b16 %v418
        %v504 = vunpack.c.h.b16 %v418
        %v505 = vunpack.c.l.b16 %v419
        %v506 = vunpack.c.h.b16 %v419
        %v507 = vunpack.c.l.b16 %v420
        %v508 = vunpack.c.h.b16 %v420
        %v509 = vunpack.c.l.b16 %v421
        %v510 = vunpack.c.h.b16 %v421
        %v511 = vunpack.c.l.b16 %v422
        %v512 = vunpack.c.h.b16 %v422
        %v513 = vunpack.c.l.b16 %v423
        %v514 = vunpack.c.h.b16 %v423
        %v515 = vunpack.c.l.b16 %v424
        %v516 = vunpack.c.h.b16 %v424
        %v517 = vunpack.c.l.b16 %v425
        %v518 = vunpack.c.h.b16 %v425
        %v519 = vunpack.c.l.b16 %v426
        %v520 = vunpack.c.h.b16 %v426
        %v521 = vunpack.c.l.b16 %v427
        %v522 = vunpack.c.h.b16 %v427
        %v523 = vunpack.c.l.b16 %v428
        %v524 = vunpack.c.h.b16 %v428
        %v525 = vpack.c.b16 %v463, %v461
        %v526 = vpack.c.b16 %v464, %v462
        %v527 = vpack.c.b16 %v467, %v465
        %v528 = vpack.c.b16 %v468, %v466
        %v529 = vpack.c.b16 %v471, %v469
        %v530 = vpack.c.b16 %v472, %v470
        %v531 = vpack.c.b16 %v475, %v473
        %v532 = vpack.c.b16 %v476, %v474
        %v533 = vpack.c.b16 %v479, %v477
        %v534 = vpack.c.b16 %v480, %v478
        %v535 = vpack.c.b16 %v483, %v481
        %v536 = vpack.c.b16 %v484, %v482
        %v537 = vpack.c.b16 %v487, %v485
        %v538 = vpack.c.b16 %v488, %v486
        %v539 = vpack.c.b16 %v491, %v489
        %v540 = vpack.c.b16 %v492, %v490
        %v541 = vpack.c.b16 %v495, %v493
        %v542 = vpack.c.b16 %v496, %v494
        %v543 = vpack.c.b16 %v499, %v497
        %v544 = vpack.c.b16 %v500, %v498
        %v545 = vpack.c.b16 %v503, %v501
        %v546 = vpack.c.b16 %v504, %v502
        %v547 = vpack.c.b16 %v507, %v505
        %v548 = vpack.c.b16 %v508, %v506
        %v549 = vpack.c.b16 %v511, %v509
        %v550 = vpack.c.b16 %v512, %v510
        %v551 = vpack.c.b16 %v515, %v513
        %v552 = vpack.c.b16 %v516, %v514
        %v553 = vpack.c.b16 %v519, %v517
        %v554 = vpack.c.b16 %v520, %v518
        %v555 = vpack.c.b16 %v523, %v521
        %v556 = vpack.c.b16 %v524, %v522
        %589 = vmatprep.subr.bf16.mxu0 %v526
        %590 = vmatpush1.bf16.msra.mxu0 %v525
        %591 = vmatprep.subr.bf16.mxu0 %v528
        %592 = vmatpush1.bf16.msra.mxu0 %v527
        %593 = vmatprep.subr.bf16.mxu0 %v530
        %594 = vmatpush1.bf16.msra.mxu0 %v529
        %595 = vmatprep.subr.bf16.mxu0 %v532
        %596 = vmatpush1.bf16.msra.mxu0 %v531
        %597 = vmatprep.subr.bf16.mxu0 %v534
        %598 = vmatpush1.bf16.msra.mxu0 %v533
        %599 = vmatprep.subr.bf16.mxu0 %v536
        %600 = vmatpush1.bf16.msra.mxu0 %v535
        %601 = vmatprep.subr.bf16.mxu0 %v538
        %602 = vmatpush1.bf16.msra.mxu0 %v537
        %603 = vmatprep.subr.bf16.mxu0 %v540
        %604 = vmatpush1.bf16.msra.mxu0 %v539
        %605 = vmatprep.subr.bf16.mxu0 %v542
        %606 = vmatpush1.bf16.msra.mxu0 %v541
        %607 = vmatprep.subr.bf16.mxu0 %v544
        %608 = vmatpush1.bf16.msra.mxu0 %v543
        %609 = vmatprep.subr.bf16.mxu0 %v546
        %610 = vmatpush1.bf16.msra.mxu0 %v545
        %611 = vmatprep.subr.bf16.mxu0 %v548
        %612 = vmatpush1.bf16.msra.mxu0 %v547
        %613 = vmatprep.subr.bf16.mxu0 %v550
        %614 = vmatpush1.bf16.msra.mxu0 %v549
        %615 = vmatprep.subr.bf16.mxu0 %v552
        %616 = vmatpush1.bf16.msra.mxu0 %v551
        %617 = vmatprep.subr.bf16.mxu0 %v554
        %618 = vmatpush1.bf16.msra.mxu0 %v553
        %619 = vmatprep.subr.bf16.mxu0 %v556
        %620 = vmatpush1.bf16.msra.mxu0 %v555
        %621 = vmatprep.mubr.bf16.mxu0 %v396
        %622 = vmatmul.mubr.bf16.gmra.mrb[0].mxu0 %v395
        %v623 = vpop.f32.mrb[0].mxu0
        %v624 = vadd.f32 0.0, %v623
        %v625 = vpop.f32.mrb[0].mxu0
        %v626 = vadd.f32 0.0, %v625
        %v627 = vpop.f32.mrb[0].mxu0
        %v628 = vpop.f32.mrb[0].mxu0
        %629 = vdwg.mxu0
        %v632 = vcombine.low %v624, %v626
        %v634 = vunpack.c.l.s4 1983009808
        %v635 = vunpack.c.0.s8 %v634
        %v636 = vlaneseq
        %v637 = vshrl.u32 %v636, 7
        %v638 = vsub.s32 %v635, %v637
        %v639 = vrot.slane %v632, %v638
        %v641 = vadd.f32 %v382, %v639
        %642 = vst [vmem:[#allocation2] sm:$0xf] %v641
        %p643 = scmp.eq.s32.totalorder %s25, 3
        // Predicated region
        $region69: #{tpu_custom_call.1} parent=55 // pred_check
          %p644 = pneg %p643
        $region70: #{tpu_custom_call.1} parent=55 // pred_check_branch
          %646 = sbr.rel (%p644) target = $region72
        $region71: #{tpu_custom_call.1} parent=55 // pred_region
          %v647 = vld [vmem:[#allocation2] sm:$0xf]
          %v648 = vld [vmem:[%s2] sm:$0x3]
          %v650 = vlaneseq
          %v651 = vshrl.u32 %v650, 7
          %v652 = vsub.s32 0, %v651
          %v653 = vrot.slane %v648, %v652
          %v654 = vlaneseq
          %v655 = vshrl.u32 %v654, 7
          %v656 = vsub.s32 1, %v655
          %v657 = vrot.slane %v648, %v656
          %v658 = vcombine.low %v653, %v657
          %v660 = vunpack.c.l.s4 1983009808
          %v661 = vunpack.c.0.s8 %v660
          %v662 = vlaneseq
          %v663 = vshrl.u32 %v662, 7
          %v664 = vsub.s32 %v661, %v663
          %v665 = vrot.slane %v658, %v664
          %v667 = vadd.f32 %v647, %v665
          %v668 = vmax.f32 %v667, 0.0
          %v671 = vunpack.c.l.s4 1983009808
          %v672 = vunpack.c.0.s8 %v671
          %v673 = vlaneseq
          %v674 = vshrl.u32 %v673, 7
          %v675 = vsub.s32 %v672, %v674
          %v676 = vrot.slane %v668, %v675
          %v677 = vcombine.high %v676, %v676
          %v680 = vpack.c.bf16 %v676, %v676
          %v681 = vpack.c.bf16 %v677, %v677
          %v682 = vld [vmem:[%s3] sm:$0xf]
          %v683 = vld [vmem:[%s3 + $0x4] sm:$0xf]
          %v684 = vld [vmem:[%s3 + $0x8] sm:$0xf]
          %v685 = vld [vmem:[%s3 + $0xc] sm:$0xf]
          %v686 = vld [vmem:[%s3 + $0x10] sm:$0xf]
          %v687 = vld [vmem:[%s3 + $0x14] sm:$0xf]
          %v688 = vld [vmem:[%s3 + $0x18] sm:$0xf]
          %v689 = vld [vmem:[%s3 + $0x1c] sm:$0xf]
          %v690 = vld [vmem:[%s3 + $0x20] sm:$0xf]
          %v691 = vld [vmem:[%s3 + $0x24] sm:$0xf]
          %v692 = vld [vmem:[%s3 + $0x28] sm:$0xf]
          %v693 = vld [vmem:[%s3 + $0x2c] sm:$0xf]
          %v694 = vld [vmem:[%s3 + $0x30] sm:$0xf]
          %v695 = vld [vmem:[%s3 + $0x34] sm:$0xf]
          %v696 = vld [vmem:[%s3 + $0x38] sm:$0xf]
          %v697 = vld [vmem:[%s3 + $0x3c] sm:$0xf]
          %v698 = vld [vmem:[%s3 + $0x40] sm:$0xf]
          %v699 = vld [vmem:[%s3 + $0x44] sm:$0xf]
          %v700 = vld [vmem:[%s3 + $0x48] sm:$0xf]
          %v701 = vld [vmem:[%s3 + $0x4c] sm:$0xf]
          %v702 = vld [vmem:[%s3 + $0x50] sm:$0xf]
          %v703 = vld [vmem:[%s3 + $0x54] sm:$0xf]
          %v704 = vld [vmem:[%s3 + $0x58] sm:$0xf]
          %v705 = vld [vmem:[%s3 + $0x5c] sm:$0xf]
          %v706 = vld [vmem:[%s3 + $0x60] sm:$0xf]
          %v707 = vld [vmem:[%s3 + $0x64] sm:$0xf]
          %v708 = vld [vmem:[%s3 + $0x68] sm:$0xf]
          %v709 = vld [vmem:[%s3 + $0x6c] sm:$0xf]
          %v710 = vld [vmem:[%s3 + $0x70] sm:$0xf]
          %v711 = vld [vmem:[%s3 + $0x74] sm:$0xf]
          %v712 = vld [vmem:[%s3 + $0x78] sm:$0xf]
          %v713 = vld [vmem:[%s3 + $0x7c] sm:$0xf]
          %v714 = vld [vmem:[#allocation6] sm:$0x1]
          %v716 = vlaneseq
          %v717 = vshrl.u32 %v716, 7
          %v718 = vsub.s32 0, %v717
          %v719 = vrot.slane %v714, %v718
          %v753 = vunpack.c.l.b16 %v682
          %v754 = vunpack.c.l.b16 %v683
          %v755 = vunpack.c.l.b16 %v684
          %v756 = vunpack.c.l.b16 %v685
          %v757 = vunpack.c.l.b16 %v686
          %v758 = vunpack.c.l.b16 %v687
          %v759 = vunpack.c.l.b16 %v688
          %v760 = vunpack.c.l.b16 %v689
          %v761 = vunpack.c.l.b16 %v690
          %v762 = vunpack.c.l.b16 %v691
          %v763 = vunpack.c.l.b16 %v692
          %v764 = vunpack.c.l.b16 %v693
          %v765 = vunpack.c.l.b16 %v694
          %v766 = vunpack.c.l.b16 %v695
          %v767 = vunpack.c.l.b16 %v696
          %v768 = vunpack.c.l.b16 %v697
          %v769 = vunpack.c.l.b16 %v698
          %v770 = vunpack.c.l.b16 %v699
          %v771 = vunpack.c.l.b16 %v700
          %v772 = vunpack.c.l.b16 %v701
          %v773 = vunpack.c.l.b16 %v702
          %v774 = vunpack.c.l.b16 %v703
          %v775 = vunpack.c.l.b16 %v704
          %v776 = vunpack.c.l.b16 %v705
          %v777 = vunpack.c.l.b16 %v706
          %v778 = vunpack.c.l.b16 %v707
          %v779 = vunpack.c.l.b16 %v708
          %v780 = vunpack.c.l.b16 %v709
          %v781 = vunpack.c.l.b16 %v710
          %v782 = vunpack.c.l.b16 %v711
          %v783 = vunpack.c.l.b16 %v712
          %v784 = vunpack.c.l.b16 %v713
          %v785 = vpack.c.b16 %v754, %v753
          %v786 = vpack.c.b16 %v756, %v755
          %v787 = vpack.c.b16 %v758, %v757
          %v788 = vpack.c.b16 %v760, %v759
          %v789 = vpack.c.b16 %v762, %v761
          %v790 = vpack.c.b16 %v764, %v763
          %v791 = vpack.c.b16 %v766, %v765
          %v792 = vpack.c.b16 %v768, %v767
          %v793 = vpack.c.b16 %v770, %v769
          %v794 = vpack.c.b16 %v772, %v771
          %v795 = vpack.c.b16 %v774, %v773
          %v796 = vpack.c.b16 %v776, %v775
          %v797 = vpack.c.b16 %v778, %v777
          %v798 = vpack.c.b16 %v780, %v779
          %v799 = vpack.c.b16 %v782, %v781
          %v800 = vpack.c.b16 %v784, %v783
          %817 = vmatprep.subr.bf16.mxu0 0
          %818 = vmatpush1.bf16.msra.mxu0 %v785
          %819 = vmatprep.subr.bf16.mxu0 0
          %820 = vmatpush1.bf16.msra.mxu0 %v786
          %821 = vmatprep.subr.bf16.mxu0 0
          %822 = vmatpush1.bf16.msra.mxu0 %v787
          %823 = vmatprep.subr.bf16.mxu0 0
          %824 = vmatpush1.bf16.msra.mxu0 %v788
          %825 = vmatprep.subr.bf16.mxu0 0
          %826 = vmatpush1.bf16.msra.mxu0 %v789
          %827 = vmatprep.subr.bf16.mxu0 0
          %828 = vmatpush1.bf16.msra.mxu0 %v790
          %829 = vmatprep.subr.bf16.mxu0 0
          %830 = vmatpush1.bf16.msra.mxu0 %v791
          %831 = vmatprep.subr.bf16.mxu0 0
          %832 = vmatpush1.bf16.msra.mxu0 %v792
          %833 = vmatprep.subr.bf16.mxu0 0
          %834 = vmatpush1.bf16.msra.mxu0 %v793
          %835 = vmatprep.subr.bf16.mxu0 0
          %836 = vmatpush1.bf16.msra.mxu0 %v794
          %837 = vmatprep.subr.bf16.mxu0 0
          %838 = vmatpush1.bf16.msra.mxu0 %v795
          %839 = vmatprep.subr.bf16.mxu0 0
          %840 = vmatpush1.bf16.msra.mxu0 %v796
          %841 = vmatprep.subr.bf16.mxu0 0
          %842 = vmatpush1.bf16.msra.mxu0 %v797
          %843 = vmatprep.subr.bf16.mxu0 0
          %844 = vmatpush1.bf16.msra.mxu0 %v798
          %845 = vmatprep.subr.bf16.mxu0 0
          %846 = vmatpush1.bf16.msra.mxu0 %v799
          %847 = vmatprep.subr.bf16.mxu0 0
          %848 = vmatpush1.bf16.msra.mxu0 %v800
          %849 = vmatprep.mubr.bf16.mxu0 %v681
          %850 = vmatmul.mubr.bf16.gmra.mrb[0].mxu0 %v680
          %v851 = vpop.f32.mrb[0].mxu0
          %v852 = vadd.f32 %v719, %v851
          %v853 = vpop.f32.mrb[0].mxu0
          %v854 = vpop.f32.mrb[0].mxu0
          %v855 = vpop.f32.mrb[0].mxu0
          %856 = vdwg.mxu0
          %v857 = vmax.f32 %v852, 0.0
          %v858 = vpack.c.bf16 %v857, %v857
          %v859 = vld [vmem:[%s5] sm:$0xf]
          %v860 = vld [vmem:[%s5 + $0x4] sm:$0xf]
          %v861 = vld [vmem:[%s5 + $0x8] sm:$0xf]
          %v862 = vld [vmem:[%s5 + $0xc] sm:$0xf]
          %v863 = vld [vmem:[%s5 + $0x10] sm:$0xf]
          %v864 = vld [vmem:[%s5 + $0x14] sm:$0xf]
          %v865 = vld [vmem:[%s5 + $0x18] sm:$0xf]
          %v866 = vld [vmem:[%s5 + $0x1c] sm:$0xf]
          %v867 = vld [vmem:[%s5 + $0x20] sm:$0xf]
          %v868 = vld [vmem:[%s5 + $0x24] sm:$0xf]
          %v869 = vld [vmem:[%s5 + $0x28] sm:$0xf]
          %v870 = vld [vmem:[%s5 + $0x2c] sm:$0xf]
          %v871 = vld [vmem:[%s5 + $0x30] sm:$0xf]
          %v872 = vld [vmem:[%s5 + $0x34] sm:$0xf]
          %v873 = vld [vmem:[%s5 + $0x38] sm:$0xf]
          %v874 = vld [vmem:[%s5 + $0x3c] sm:$0xf]
          %v875 = vld [vmem:[%s6] sm:$0x1]
          %v877 = vlaneseq
          %v878 = vshrl.u32 %v877, 7
          %v879 = vsub.s32 0, %v878
          %v880 = vrot.slane %v875, %v879
          %v898 = vunpack.c.l.b16 %v859
          %v899 = vunpack.c.l.b16 %v860
          %v900 = vunpack.c.l.b16 %v861
          %v901 = vunpack.c.l.b16 %v862
          %v902 = vunpack.c.l.b16 %v863
          %v903 = vunpack.c.l.b16 %v864
          %v904 = vunpack.c.l.b16 %v865
          %v905 = vunpack.c.l.b16 %v866
          %v906 = vunpack.c.l.b16 %v867
          %v907 = vunpack.c.l.b16 %v868
          %v908 = vunpack.c.l.b16 %v869
          %v909 = vunpack.c.l.b16 %v870
          %v910 = vunpack.c.l.b16 %v871
          %v911 = vunpack.c.l.b16 %v872
          %v912 = vunpack.c.l.b16 %v873
          %v913 = vunpack.c.l.b16 %v874
          %v914 = vpack.c.b16 %v899, %v898
          %v915 = vpack.c.b16 %v901, %v900
          %v916 = vpack.c.b16 %v903, %v902
          %v917 = vpack.c.b16 %v905, %v904
          %v918 = vpack.c.b16 %v907, %v906
          %v919 = vpack.c.b16 %v909, %v908
          %v920 = vpack.c.b16 %v911, %v910
          %v921 = vpack.c.b16 %v913, %v912
          %930 = vmatprep.subr.bf16.mxu0 0
          %931 = vmatpush1.bf16.msra.mxu0 %v914
          %932 = vmatprep.subr.bf16.mxu0 0
          %933 = vmatpush1.bf16.msra.mxu0 %v915
          %934 = vmatprep.subr.bf16.mxu0 0
          %935 = vmatpush1.bf16.msra.mxu0 %v916
          %936 = vmatprep.subr.bf16.mxu0 0
          %937 = vmatpush1.bf16.msra.mxu0 %v917
          %938 = vmatprep.subr.bf16.mxu0 0
          %939 = vmatpush1.bf16.msra.mxu0 %v918
          %940 = vmatprep.subr.bf16.mxu0 0
          %941 = vmatpush1.bf16.msra.mxu0 %v919
          %942 = vmatprep.subr.bf16.mxu0 0
          %943 = vmatpush1.bf16.msra.mxu0 %v920
          %944 = vmatprep.subr.bf16.mxu0 0
          %945 = vmatpush1.bf16.msra.mxu0 %v921
          %946 = vmatprep.subr.bf16.mxu0 0
          %947 = vmatpush1.bf16.msra.mxu0 0
          %948 = vmatprep.subr.bf16.mxu0 0
          %949 = vmatpush1.bf16.msra.mxu0 0
          %950 = vmatprep.subr.bf16.mxu0 0
          %951 = vmatpush1.bf16.msra.mxu0 0
          %952 = vmatprep.subr.bf16.mxu0 0
          %953 = vmatpush1.bf16.msra.mxu0 0
          %954 = vmatprep.subr.bf16.mxu0 0
          %955 = vmatpush1.bf16.msra.mxu0 0
          %956 = vmatprep.subr.bf16.mxu0 0
          %957 = vmatpush1.bf16.msra.mxu0 0
          %958 = vmatprep.subr.bf16.mxu0 0
          %959 = vmatpush1.bf16.msra.mxu0 0
          %960 = vmatprep.subr.bf16.mxu0 0
          %961 = vmatpush1.bf16.msra.mxu0 0
          %962 = vmatprep.mubr.bf16.mxu0 0
          %963 = vmatmul.mubr.bf16.gmra.mrb[0].mxu0 %v858
          %v964 = vpop.f32.mrb[0].mxu0
          %v965 = vadd.f32 %v880, %v964
          %v966 = vpop.f32.mrb[0].mxu0
          %v967 = vpop.f32.mrb[0].mxu0
          %v968 = vpop.f32.mrb[0].mxu0
          %969 = vdwg.mxu0
          %v970 = vmax.f32 %v965, 0.0
          %v971 = vpack.c.bf16 %v970, %v970
          %v972 = vld [vmem:[%s7] sm:$0xf]
          %v973 = vld [vmem:[%s7 + $0x4] sm:$0xf]
          %v974 = vld [vmem:[%s7 + $0x8] sm:$0xf]
          %v975 = vld [vmem:[%s7 + $0xc] sm:$0xf]
          %v976 = vld [vmem:[%s7 + $0x10] sm:$0xf]
          %v977 = vld [vmem:[%s7 + $0x14] sm:$0xf]
          %v978 = vld [vmem:[%s7 + $0x18] sm:$0xf]
          %v979 = vld [vmem:[%s7 + $0x1c] sm:$0xf]
          %v980 = vld [vmem:[%s8] sm:$0x1]
          %v982 = vlaneseq
          %v983 = vshrl.u32 %v982, 7
          %v984 = vsub.s32 0, %v983
          %v985 = vrot.slane %v980, %v984
          %v995 = vunpack.c.l.b16 %v972
          %v996 = vunpack.c.l.b16 %v973
          %v997 = vunpack.c.l.b16 %v974
          %v998 = vunpack.c.l.b16 %v975
          %v999 = vunpack.c.l.b16 %v976
          %v1000 = vunpack.c.l.b16 %v977
          %v1001 = vunpack.c.l.b16 %v978
          %v1002 = vunpack.c.l.b16 %v979
          %v1003 = vpack.c.b16 %v996, %v995
          %v1004 = vpack.c.b16 %v998, %v997
          %v1005 = vpack.c.b16 %v1000, %v999
          %v1006 = vpack.c.b16 %v1002, %v1001
          %vm1011 = vcmask 523264
          %v1013 = vsel %vm1011, %v971, 0
          %1015 = vmatprep.subr.bf16.mxu0 0
          %1016 = vmatpush1.bf16.msra.mxu0 %v1003
          %1017 = vmatprep.subr.bf16.mxu0 0
          %1018 = vmatpush1.bf16.msra.mxu0 %v1004
          %1019 = vmatprep.subr.bf16.mxu0 0
          %1020 = vmatpush1.bf16.msra.mxu0 %v1005
          %1021 = vmatprep.subr.bf16.mxu0 0
          %1022 = vmatpush1.bf16.msra.mxu0 %v1006
          %1023 = vmatprep.subr.bf16.mxu0 0
          %1024 = vmatpush1.bf16.msra.mxu0 0
          %1025 = vmatprep.subr.bf16.mxu0 0
          %1026 = vmatpush1.bf16.msra.mxu0 0
          %1027 = vmatprep.subr.bf16.mxu0 0
          %1028 = vmatpush1.bf16.msra.mxu0 0
          %1029 = vmatprep.subr.bf16.mxu0 0
          %1030 = vmatpush1.bf16.msra.mxu0 0
          %1031 = vmatprep.subr.bf16.mxu0 0
          %1032 = vmatpush1.bf16.msra.mxu0 0
          %1033 = vmatprep.subr.bf16.mxu0 0
          %1034 = vmatpush1.bf16.msra.mxu0 0
          %1035 = vmatprep.subr.bf16.mxu0 0
          %1036 = vmatpush1.bf16.msra.mxu0 0
          %1037 = vmatprep.subr.bf16.mxu0 0
          %1038 = vmatpush1.bf16.msra.mxu0 0
          %1039 = vmatprep.subr.bf16.mxu0 0
          %1040 = vmatpush1.bf16.msra.mxu0 0
          %1041 = vmatprep.subr.bf16.mxu0 0
          %1042 = vmatpush1.bf16.msra.mxu0 0
          %1043 = vmatprep.subr.bf16.mxu0 0
          %1044 = vmatpush1.bf16.msra.mxu0 0
          %1045 = vmatprep.subr.bf16.mxu0 0
          %1046 = vmatpush1.bf16.msra.mxu0 0
          %1047 = vmatprep.mubr.bf16.mxu0 0
          %1048 = vmatmul.mubr.bf16.gmra.mrb[0].mxu0 %v1013
          %v1049 = vpop.f32.mrb[0].mxu0
          %v1050 = vadd.f32 %v985, %v1049
          %v1051 = vpop.f32.mrb[0].mxu0
          %v1052 = vpop.f32.mrb[0].mxu0
          %v1053 = vpop.f32.mrb[0].mxu0
          %1054 = vdwg.mxu0
          %vm1055 = vcmask 74752
          %v1056 = vsel %vm1055, %v1050, -inf
          %1057 = vmax.xlane.f32.xlu0 %v1056
          %v1058 = vpop.xlane.xlu0 %1057
          %v1059 = vsub.f32 %v1050, %v1058
          %v1060 = vmul.f32 %v1059, 1.442695
          %v1061 = vpow.pop %v1060
          %v1062 = vsel %vm1055, %v1061, 0.0
          %1063 = vadd.xlane.f32.xlu0 %v1062
          %v1064 = vpop.xlane.xlu0 %1063
          %v1065 = vrcp.pop %v1064
          %v1066 = vmul.f32 %v1061, %v1065
          %1067 = vst.msk [vmem:[#allocation8] sm:$0x3] %vm1055, %v1066
        $region72: #{tpu_custom_call.1} parent=55 // pred_fallthru
          _
        // Predicated region
        $region73: #{tpu_custom_call.1} parent=55 // pred_check
          %p1068 = pneg %p237
        $region74: #{tpu_custom_call.1} parent=55 // pred_check_branch
          %1070 = sbr.rel (%p1068) target = $region76
        $region75: #{tpu_custom_call.1} parent=55 // pred_region
          %s1072 = ssub.s32 32, 32
          %1073 = vsyncadd [#allocation5], %s1072
          %s1075 = sshll.u32 [#allocation8], 4
          %s1076 = int_to_ptr.vmem [resolvable:$true] %s1075
          %1078 = dma.vmem_to_hbm [thread:$0]  %s1076, 32, %s9, [#allocation5]
        $region76: #{tpu_custom_call.1} parent=55 // pred_fallthru
          _
        // Predicated region
        $region77: #{tpu_custom_call.1} parent=55 // pred_check
          %p1079 = pneg %p237
        $region78: #{tpu_custom_call.1} parent=55 // pred_check_branch
          %1081 = sbr.rel (%p1079) target = $region80
        $region79: #{tpu_custom_call.1} parent=55 // pred_region
          %1082 = dma.done [#allocation5], 32
        $region80: #{tpu_custom_call.1} parent=55 // pred_fallthru
          _
      $region56: #{tpu_custom_call.1} parent=5 // pred_fallthru
        _
      %p1083 = scmp.le.s32.totalorder 2, %s20
      // Predicated region
      $region81: #{tpu_custom_call.1} parent=5 // pred_check
        %p1084 = pneg %p1083
      $region82: #{tpu_custom_call.1} parent=5 // pred_check_branch
        %1086 = sbr.rel (%p1084) target = $region84
      $region83: #{tpu_custom_call.1} parent=5 // pred_region
        %s1087 = ssub.s32 %s20, 2
      $region84: #{tpu_custom_call.1} parent=5 // pred_fallthru
        _
    $region6: #{tpu_custom_call.1} parent=1 // loop_footer
      %s24 = sadd.s32 1, %s20
    $region7: #{tpu_custom_call.1} parent=1 // loop_footer_branch
      %19 = sbr.rel target = $region3
    $region8: #{tpu_custom_call.1} parent=1 // loop_exit
      _
    %1088 = vsyncpa [#allocation4], 1
    %s1089 = scalar_lea.sflag [#allocation4], 1
    %1090 = vsyncpa %s1089, 1
    %1091 = vsyncpa [#allocation7], 1
    %1092 = vsyncpa [#allocation5], 1
    %s1093 = scalar_lea.sflag [#allocation5], 1
    %1094 = vsyncpa %s1093, 1

</llo_original>
